<compile_context>
chip_gen: v7x
topology: tpu7x:2x2x1
jax: 0.10.0
libtpu: 0.0.40
codegen_flags: <defaults>
</compile_context>

<pallas_src>
import functools

import jax
import jax.numpy as jnp
from jax.experimental import pallas as pl
from jax.experimental.pallas import tpu as pltpu

_LANE = 128
_M_PLUS = 0.9
_M_MINUS = 0.1


# ------------------------- Pallas kernel ------------------------- #

def _margin_loss_kernel(x_ref, t_ref, o_ref, acc_ref, *, loss_lambda):
    # x_ref/t_ref: (tm, 128) lane-dense tiles of flattened inputs / labels.
    # acc_ref:     (8, 128) f32 running accumulator (persists across grid steps).
    # o_ref:       (1, 1)   f32 total loss, written only on the last step.
    i = pl.program_id(0)

    @pl.when(i == 0)
    def _():
        acc_ref[...] = jnp.zeros_like(acc_ref)

    x = x_ref[...]
    t = t_ref[...]
    pos = jnp.maximum(_M_PLUS - x, 0.0)
    neg = jnp.maximum(x - _M_MINUS, 0.0)
    lk = t * (pos * pos) + loss_lambda * (1.0 - t) * (neg * neg)

    # (tm, 128) -> (tm//8, 8, 128); leading-axis sum is plain vreg adds (VPU),
    # keeping the accumulator lane/sublane dense. Cross-lane reduce happens
    # exactly once, at the end.
    tm = lk.shape[0]
    acc_ref[...] += lk.reshape(tm // 8, 8, _LANE).sum(axis=0)

    @pl.when(i == pl.num_programs(0) - 1)
    def _():
        o_ref[...] = jnp.sum(acc_ref[...], axis=(0, 1), keepdims=True)


# ------------------------- wrapper ------------------------- #

def margin_loss(inputs, labels, *, size_average=False, loss_lambda=0.5):
    """inputs, labels: (B, C) float arrays (capsule lengths / one-hot targets)."""
    B = inputs.shape[0]

    x = inputs.reshape(-1).astype(jnp.float32)
    t = labels.reshape(-1).astype(jnp.float32)
    n = x.shape[0]

    # Lane-dense padding: rows of 128; padded (x=0, t=0) elements contribute 0.
    rows = -(-n // _LANE)
    tm = min(512, ((rows + 7) // 8) * 8)          # tile rows (multiple of 8)
    rows_pad = -(-rows // tm) * tm
    pad = rows_pad * _LANE - n
    if pad:
        x = jnp.pad(x, (0, pad))
        t = jnp.pad(t, (0, pad))
    x2 = x.reshape(rows_pad, _LANE)
    t2 = t.reshape(rows_pad, _LANE)

    grid = (rows_pad // tm,)

    total = pl.pallas_call(
        functools.partial(_margin_loss_kernel, loss_lambda=float(loss_lambda)),
        out_shape=jax.ShapeDtypeStruct((1, 1), jnp.float32),
        grid_spec=pltpu.PrefetchScalarGridSpec(
            num_scalar_prefetch=0,
            grid=grid,
            in_specs=[
                pl.BlockSpec((tm, _LANE), lambda i: (i, 0)),
                pl.BlockSpec((tm, _LANE), lambda i: (i, 0)),
            ],
            out_specs=pl.BlockSpec((1, 1), lambda i: (0, 0)),
            scratch_shapes=[pltpu.VMEM((8, _LANE), jnp.float32)],
        ),
        compiler_params=pltpu.CompilerParams(
            dimension_semantics=("arbitrary",),   # reduction axis
        ),
    )(x2, t2)

    loss = total[0, 0]
    if size_average:
        loss = loss / B
    return loss


# ------------------------- self-test ------------------------- #

if __name__ == "__main__":
    # Small shapes consistent with the module: capsule lengths for 10 classes.
    B, C = 8, 10

    key = jax.random.PRNGKey(0)
    kx, kl = jax.random.split(key)

    inputs = jax.random.uniform(kx, (B, C), dtype=jnp.float32)     # ||v_k|| in [0, 1)
    lab_idx = jax.random.randint(kl, (B,), 0, C)
    labels = jax.nn.one_hot(lab_idx, C, dtype=jnp.float32)          # one-hot T_k

    loss = margin_loss(inputs, labels, size_average=False, loss_lambda=0.5)
    loss = jax.block_until_ready(loss)

    # pure-JAX reference (matches the PyTorch forward exactly)
    pos = jnp.maximum(_M_PLUS - inputs, 0.0)
    neg = jnp.maximum(inputs - _M_MINUS, 0.0)
    lk = labels * pos ** 2 + 0.5 * (1.0 - labels) * neg ** 2
    ref = lk.sum(axis=1).sum()

    assert jnp.allclose(loss, ref, rtol=1e-5, atol=1e-5), (float(loss), float(ref))

    # also sanity-check the size_average=True path
    loss_avg = jax.block_until_ready(
        margin_loss(inputs, labels, size_average=True, loss_lambda=0.5))
    assert jnp.allclose(loss_avg, ref / B, rtol=1e-5, atol=1e-5)

    print("KERNEL_OK")
</pallas_src>

<mosaic_0001>
module attributes {stable_mosaic.version = 11 : i64} {
  func.func @_margin_loss_kernel(%arg0: i32, %arg1: memref<8x128xf32, #tpu.memory_space<vmem>>, %arg2: memref<8x128xf32, #tpu.memory_space<vmem>>, %arg3: memref<1x1xf32, #tpu.memory_space<vmem>>, %arg4: memref<8x128xf32, #tpu.memory_space<vmem>>) attributes {dimension_semantics = [#tpu.dimension_semantics<arbitrary>], iteration_bounds = array<i64: 1>, scalar_prefetch = 0 : i64, scratch_operands = 1 : i64, tpu.core_type = #tpu.core_type<tc>, window_params = [{transform_indices = @transform_0, window_bounds = array<i64: 8, 128>}, {transform_indices = @transform_1, window_bounds = array<i64: 8, 128>}, {pipeline_mode = #tpu.pipeline_mode<synchronous>, transform_indices = @transform_2, window_bounds = array<i64: 1, 1>}]} {
    %c0_i32 = arith.constant 0 : i32
    %0 = arith.cmpi eq, %arg0, %c0_i32 : i32
    %1 = arith.extui %0 : i1 to i32
    %c0_i32_0 = arith.constant 0 : i32
    %2 = arith.cmpi ne, %1, %c0_i32_0 : i32
    scf.if %2 {
      %cst_16 = arith.constant 0.000000e+00 : f32
      %30 = vector.broadcast %cst_16 : f32 to vector<8x128xf32>
      %c0_17 = arith.constant 0 : index
      %c0_18 = arith.constant 0 : index
      %31 = vector.load %arg4[%c0_17, %c0_18] : memref<8x128xf32, #tpu.memory_space<vmem>>, vector<8x128xf32>
      tpu.vector_store %arg4[%c0_17, %c0_18], %30 {strides = array<i32>} : memref<8x128xf32, #tpu.memory_space<vmem>>, vector<8x128xf32>,
    } else {
    }
    %c0 = arith.constant 0 : index
    %c0_1 = arith.constant 0 : index
    %3 = vector.load %arg1[%c0, %c0_1] : memref<8x128xf32, #tpu.memory_space<vmem>>, vector<8x128xf32>
    %c0_2 = arith.constant 0 : index
    %c0_3 = arith.constant 0 : index
    %4 = vector.load %arg2[%c0_2, %c0_3] : memref<8x128xf32, #tpu.memory_space<vmem>>, vector<8x128xf32>
    %cst = arith.constant 0.899999976 : f32
    %5 = vector.broadcast %cst : f32 to vector<8x128xf32>
    %6 = arith.subf %5, %3 : vector<8x128xf32>
    %cst_4 = arith.constant 0.000000e+00 : f32
    %7 = vector.broadcast %cst_4 : f32 to vector<8x128xf32>
    %8 = arith.maximumf %6, %7 : vector<8x128xf32>
    %cst_5 = arith.constant 1.000000e-01 : f32
    %9 = vector.broadcast %cst_5 : f32 to vector<8x128xf32>
    %10 = arith.subf %3, %9 : vector<8x128xf32>
    %cst_6 = arith.constant 0.000000e+00 : f32
    %11 = vector.broadcast %cst_6 : f32 to vector<8x128xf32>
    %12 = arith.maximumf %10, %11 : vector<8x128xf32>
    %13 = arith.mulf %8, %8 : vector<8x128xf32>
    %14 = arith.mulf %4, %13 : vector<8x128xf32>
    %cst_7 = arith.constant 1.000000e+00 : f32
    %15 = vector.broadcast %cst_7 : f32 to vector<8x128xf32>
    %16 = arith.subf %15, %4 : vector<8x128xf32>
    %cst_8 = arith.constant 5.000000e-01 : f32
    %17 = vector.broadcast %cst_8 : f32 to vector<8x128xf32>
    %18 = arith.mulf %17, %16 : vector<8x128xf32>
    %19 = arith.mulf %12, %12 : vector<8x128xf32>
    %20 = arith.mulf %18, %19 : vector<8x128xf32>
    %21 = arith.addf %14, %20 : vector<8x128xf32>
    %c0_9 = arith.constant 0 : index
    %c0_10 = arith.constant 0 : index
    %22 = vector.load %arg4[%c0_9, %c0_10] : memref<8x128xf32, #tpu.memory_space<vmem>>, vector<8x128xf32>
    %23 = vector.shape_cast %21 : vector<8x128xf32> to vector<1x8x128xf32>
    %cst_11 = arith.constant dense<0.000000e+00> : vector<8x128xf32>
    %24 = vector.multi_reduction <add>, %23, %cst_11 [0] : vector<1x8x128xf32> to vector<8x128xf32>
    %25 = arith.addf %22, %24 : vector<8x128xf32>
    %c0_12 = arith.constant 0 : index
    %c0_13 = arith.constant 0 : index
    %26 = vector.load %arg4[%c0_12, %c0_13] : memref<8x128xf32, #tpu.memory_space<vmem>>, vector<8x128xf32>
    tpu.vector_store %arg4[%c0_12, %c0_13], %25 {strides = array<i32>} : memref<8x128xf32, #tpu.memory_space<vmem>>, vector<8x128xf32>,
    %c0_i32_14 = arith.constant 0 : i32
    %27 = arith.cmpi eq, %arg0, %c0_i32_14 : i32
    %28 = arith.extui %27 : i1 to i32
    %c0_i32_15 = arith.constant 0 : i32
    %29 = arith.cmpi ne, %28, %c0_i32_15 : i32
    scf.if %29 {
      %c0_16 = arith.constant 0 : index
      %c0_17 = arith.constant 0 : index
      %30 = vector.load %arg4[%c0_16, %c0_17] : memref<8x128xf32, #tpu.memory_space<vmem>>, vector<8x128xf32>
      %31 = vector.shape_cast %30 : vector<8x128xf32> to vector<1x8x128xf32>
      %cst_18 = arith.constant dense<0.000000e+00> : vector<1xf32>
      %32 = vector.multi_reduction <add>, %31, %cst_18 [1, 2] : vector<1x8x128xf32> to vector<1xf32>
      %33 = vector.shape_cast %32 : vector<1xf32> to vector<1x1x1xf32>
      %34 = vector.extract %33[0, 0, 0] : f32 from vector<1x1x1xf32>
      %35 = vector.broadcast %34 : f32 to vector<1x1xf32>
      %c0_19 = arith.constant 0 : index
      %c0_20 = arith.constant 0 : index
      %36 = vector.load %arg3[%c0_19, %c0_20] : memref<1x1xf32, #tpu.memory_space<vmem>>, vector<1x1xf32>
      tpu.vector_store %arg3[%c0_19, %c0_20], %35 {strides = array<i32>} : memref<1x1xf32, #tpu.memory_space<vmem>>, vector<1x1xf32>,
    } else {
    }
    return
  }
  func.func @transform_0(%arg0: i32) -> (i32, i32) {
    %c0_i32 = arith.constant 0 : i32
    %c0_i32_0 = arith.constant 0 : i32
    return %arg0, %c0_i32 : i32, i32
  }
  func.func @transform_1(%arg0: i32) -> (i32, i32) {
    %c0_i32 = arith.constant 0 : i32
    %c0_i32_0 = arith.constant 0 : i32
    return %arg0, %c0_i32 : i32, i32
  }
  func.func @transform_2(%arg0: i32) -> (i32, i32) {
    %c0_i32 = arith.constant 0 : i32
    %c0_i32_0 = arith.constant 0 : i32
    %c0_i32_1 = arith.constant 0 : i32
    return %c0_i32, %c0_i32_0 : i32, i32
  }
}

</mosaic_0001>

<llo_original>
// kernel: tpu_custom_call.1
$region0: #{tpu_custom_call.1}
  #allocation0 [shape = 'u32[]', space=smem, size = 0x4, offset = 0x4, fixed_abs, tag = 'smem constant byte address 0x4 - core index']
  #allocation1 [shape = 'u32[144,128]{1,0:T(1,128)}', space=vmem, size = 0x12000, scoped, tag = 'internal scratch']
  #allocation2 [shape = 'f32[8,128]{1,0:T(8,128)}', space=vmem, size = 0x1000, scoped, tag = 'scratch operand']
  %s0 = inlined_call_operand.hbm [shape: f32[8,128], index: 0, kind: input, shape index: {}]
  %s1 = inlined_call_operand.hbm [shape: f32[8,128], index: 1, kind: input, shape index: {}]
  %s2 = inlined_call_operand.hbm [shape: f32[1,1], index: 2, kind: output, shape index: {}]
  %s3 = sld [smem:[#allocation0]]
  $region34: #{tpu_custom_call.1} parent=0
    _
  %s5 = ssub.s32 1, %s3
  %s6 = scalar_select 0, %s5, %s3
  $region1: #{tpu_custom_call.1} parent=0
    #allocation3 [shape = 'u8[4096]{0}', space=vmem, size = 0x1000, scoped, tag = 'input window, operand 0, single buffered']
    #allocation4 [shape = 's32[1]{0}', space=sflag, size = 0x4, scoped, tag = 'scoped memory for tpu_custom_call.1']
    #allocation5 [shape = 's32[1]{0}', space=sflag, size = 0x4, scoped, tag = 'scoped memory for tpu_custom_call.1']
    #allocation6 [shape = 'u8[4096]{0}', space=vmem, size = 0x1000, scoped, tag = 'input window, operand 1, single buffered']
    #allocation7 [shape = 's32[1]{0}', space=sflag, size = 0x4, scoped, tag = 'scoped memory for tpu_custom_call.1']
    #allocation8 [shape = 'u8[512]{0}', space=vmem, size = 0x400, scoped, tag = 'output window, operand 0, single buffered']
    %7 = vsyncpa [#allocation4], 0
    %8 = vsyncpa [#allocation7], 0
    %9 = vsyncpa [#allocation5], 0
    // Predicated region
    $region2: #{tpu_custom_call.1} parent=1 // pred_check
      _
    $region3: #{tpu_custom_call.1} parent=1 // pred_check_branch
      %11 = sbr.rel (0) target = $region5
    $region4: #{tpu_custom_call.1} parent=1 // pred_region
      %s13 = ssub.s32 128, 128
      %14 = vsyncadd [#allocation4], %s13
      %s16 = sshll.u32 [#allocation3], 4
      %s17 = int_to_ptr.vmem [resolvable:$true] %s16
      %19 = dma.hbm_to_vmem [thread:$0]  %s0, 128, %s17, [#allocation4]
    $region5: #{tpu_custom_call.1} parent=1 // pred_fallthru
      _
    // Predicated region
    $region6: #{tpu_custom_call.1} parent=1 // pred_check
      _
    $region7: #{tpu_custom_call.1} parent=1 // pred_check_branch
      %21 = sbr.rel (0) target = $region9
    $region8: #{tpu_custom_call.1} parent=1 // pred_region
      %s23 = ssub.s32 128, 128
      %24 = vsyncadd [#allocation7], %s23
      %s26 = sshll.u32 [#allocation6], 4
      %s27 = int_to_ptr.vmem [resolvable:$true] %s26
      %29 = dma.hbm_to_vmem [thread:$0]  %s1, 128, %s27, [#allocation7]
    $region9: #{tpu_custom_call.1} parent=1 // pred_fallthru
      _
    // Predicated region
    $region10: #{tpu_custom_call.1} parent=1 // pred_check
      _
    $region11: #{tpu_custom_call.1} parent=1 // pred_check_branch
      %31 = sbr.rel (0) target = $region13
    $region12: #{tpu_custom_call.1} parent=1 // pred_region
      %32 = dma.done [#allocation4], 128
    $region13: #{tpu_custom_call.1} parent=1 // pred_fallthru
      _
    // Predicated region
    $region14: #{tpu_custom_call.1} parent=1 // pred_check
      _
    $region15: #{tpu_custom_call.1} parent=1 // pred_check_branch
      %34 = sbr.rel (0) target = $region17
    $region16: #{tpu_custom_call.1} parent=1 // pred_region
      %35 = dma.done [#allocation7], 128
    $region17: #{tpu_custom_call.1} parent=1 // pred_fallthru
      _
    %p36 = scmp.eq.s32.totalorder 0, 0
    // Predicated region
    $region18: #{tpu_custom_call.1} parent=1 // pred_check
      %p37 = pneg %p36
    $region19: #{tpu_custom_call.1} parent=1 // pred_check_branch
      %39 = sbr.rel (%p37) target = $region21
    $region20: #{tpu_custom_call.1} parent=1 // pred_region
      %40 = vst [vmem:[#allocation2] sm:$0xff] 0.0
    $region21: #{tpu_custom_call.1} parent=1 // pred_fallthru
      _
    %v41 = vld [vmem:[#allocation3] sm:$0xff]
    %v42 = vld [vmem:[#allocation6] sm:$0xff]
    %v43 = vsub.f32 0.9, %v41
    %v44 = vmax.f32 %v43, 0.0
    %v45 = vsub.f32 %v41, 0.1
    %v46 = vmax.f32 %v45, 0.0
    %v47 = vmul.f32 %v44, %v44
    %v48 = vmul.f32 %v42, %v47
    %v49 = vsub.f32 1.0, %v42
    %v50 = vmul.f32 %v49, 0.5
    %v51 = vmul.f32 %v46, %v46
    %v52 = vmul.f32 %v50, %v51
    %v53 = vadd.f32 %v48, %v52
    %v54 = vld [vmem:[#allocation2] sm:$0xff]
    %v55 = vadd.f32 %v53, 0.0
    %v56 = vadd.f32 %v54, %v55
    %57 = vst [vmem:[#allocation2] sm:$0xff] %v56
    // Predicated region
    $region22: #{tpu_custom_call.1} parent=1 // pred_check
      %p58 = pneg %p36
    $region23: #{tpu_custom_call.1} parent=1 // pred_check_branch
      %60 = sbr.rel (%p58) target = $region25
    $region24: #{tpu_custom_call.1} parent=1 // pred_region
      %v61 = vld [vmem:[#allocation2] sm:$0xff]
      %62 = vadd.xlane.f32.xlu0 %v61
      %v63 = vpop.xlane.xlu0 %62
      %v64 = vrot.slane %v63, 4
      %v65 = vadd.f32 %v63, %v64
      %v66 = vrot.slane %v65, 2
      %v67 = vadd.f32 %v65, %v66
      %v68 = vrot.slane %v67, 1
      %v69 = vadd.f32 %v67, %v68
      %s70 = vtos %v69
      %v71 = vstv %s70
      %vm72 = vcmask 0
      %73 = vst.msk [vmem:[#allocation8] sm:$0x1] %vm72, %v71
    $region25: #{tpu_custom_call.1} parent=1 // pred_fallthru
      _
    // Predicated region
    $region26: #{tpu_custom_call.1} parent=1 // pred_check
      _
    $region27: #{tpu_custom_call.1} parent=1 // pred_check_branch
      %75 = sbr.rel (0) target = $region29
    $region28: #{tpu_custom_call.1} parent=1 // pred_region
      %s77 = ssub.s32 16, 16
      %78 = vsyncadd [#allocation5], %s77
      %s80 = sshll.u32 [#allocation8], 4
      %s81 = int_to_ptr.vmem [resolvable:$true] %s80
      %83 = dma.vmem_to_hbm [thread:$0]  %s81, 16, %s2, [#allocation5]
    $region29: #{tpu_custom_call.1} parent=1 // pred_fallthru
      _
    // Predicated region
    $region30: #{tpu_custom_call.1} parent=1 // pred_check
      _
    $region31: #{tpu_custom_call.1} parent=1 // pred_check_branch
      %85 = sbr.rel (0) target = $region33
    $region32: #{tpu_custom_call.1} parent=1 // pred_region
      %86 = dma.done [#allocation5], 16
    $region33: #{tpu_custom_call.1} parent=1 // pred_fallthru
      _
    %87 = vsyncpa [#allocation4], 1
    %88 = vsyncpa [#allocation7], 1
    %89 = vsyncpa [#allocation5], 1

</llo_original>
